<compile_context>
chip_gen: v7x
topology: tpu7x:2x2x1
jax: 0.10.0
libtpu: 0.0.40
codegen_flags: <defaults>
</compile_context>

<pallas_src>
import jax
import jax.numpy as jnp
from jax.experimental import pallas as pl
from jax.experimental.pallas import tpu as pltpu


_LANE = 128
_TARGET_BLOCK_BYTES = 2 * 1024 * 1024   # ~2 MiB per block, dtype-independent
_VMEM_LIMIT_BYTES = 16 * 1024 * 1024    # 4 x 2 MiB double-buffered blocks << 16 MiB


def _copy_kernel(x_ref, o_ref):
    # AdapterD.forward: identity on v_features.
    o_ref[...] = x_ref[...]


def _sublane_multiple(dtype):
    itemsize = jnp.dtype(dtype).itemsize
    return max(8, 32 // max(itemsize, 1))  # 8 for f32, 16 for bf16, 32 for int8


def _choose_lane_width(total):
    """Widest multiple of 128 (up to 2048 lanes) that exactly divides total."""
    for k in (16, 8, 4, 2, 1):
        width = _LANE * k
        if total % width == 0:
            return width
    return None


def _choose_block_rows(rows, width, itemsize, sub):
    """Pick a block row count: ~2 MiB/block, exact divisor of rows when possible,
    and >=2 grid steps for small arrays so both v7x TensorCores get work."""
    max_rows_by_bytes = max(sub, _TARGET_BLOCK_BYTES // (width * itemsize))
    if rows <= max_rows_by_bytes:
        # Small array: split in two sublane-aligned halves when that divides
        # exactly (v7x two-TC win); otherwise one full-extent block.
        if rows % (2 * sub) == 0:
            return rows // 2
        return rows  # full extent -> always a legal block shape
    # Largest divisor of rows that is a multiple of sub and <= max_rows_by_bytes.
    cand = (max_rows_by_bytes // sub) * sub
    while cand >= sub:
        if rows % cand == 0:
            return cand
        cand -= sub
    # No clean divisor: sublane-aligned block; last tile may be ragged.
    return (max_rows_by_bytes // sub) * sub


def adapter_d_forward(v_features, params=None):
    """AdapterD.forward: pure identity on v_features (no kernel, no HBM traffic).

    `params` is accepted for interface parity with the PyTorch module but is
    intentionally unused, exactly matching the reference forward.
    """
    del params  # never read by the reference forward
    return v_features


def adapter_d_forward_pallas(v_features, params=None):
    """Pallas copy-kernel variant of AdapterD.forward (interface/parity demo).

    Semantically identical to `adapter_d_forward`, but materializes the
    identity through a tiled VMEM copy so a kernel actually runs.
    """
    del params  # never read by the reference forward
    orig_shape = v_features.shape
    dtype = v_features.dtype
    itemsize = jnp.dtype(dtype).itemsize
    total = int(v_features.size)

    if total == 0 or total % _LANE != 0:
        # Identity anyway; avoid a whole-array single-block kernel that could
        # exceed scoped VMEM and would force masked sub-128-lane stores.
        return v_features

    width = _choose_lane_width(total)
    rows = total // width
    sub = _sublane_multiple(dtype)
    block_rows = _choose_block_rows(rows, width, itemsize, sub)
    grid = (pl.cdiv(rows, block_rows),)

    x2d = v_features.reshape(rows, width)
    out2d = pl.pallas_call(
        _copy_kernel,
        out_shape=jax.ShapeDtypeStruct((rows, width), dtype),
        grid=grid,
        in_specs=[pl.BlockSpec((block_rows, width), lambda i: (i, 0))],
        out_specs=pl.BlockSpec((block_rows, width), lambda i: (i, 0)),
        compiler_params=pltpu.CompilerParams(
            dimension_semantics=("parallel",),
            vmem_limit_bytes=_VMEM_LIMIT_BYTES,
        ),
    )(x2d)
    return out2d.reshape(orig_shape)


def init_adapter_d_params(chunk_len=15, v_feature_dim=128, n_embd=4096,
                          dtype=jnp.float32):
    """AdapterD.__init__ parameters (all zeros, concrete arrays).

    forward() never reads them; they exist only for module/interface parity.
    """
    out_dim = chunk_len * v_feature_dim
    return {
        "adapter.weight": jnp.zeros((out_dim, n_embd), dtype=dtype),
        "adapter.bias": jnp.zeros((out_dim,), dtype=dtype),
    }


if __name__ == "__main__":
    key = jax.random.PRNGKey(0)

    # Small, forward-consistent shapes: batch=2, seq=8, feature=32.
    B, T, D = 2, 8, 32
    v_features = jax.random.normal(key, (B, T, D), dtype=jnp.float32)

    # Scaled-down hyperparameters; params are unused in forward.
    params = init_adapter_d_params(chunk_len=3, v_feature_dim=32, n_embd=32)

    # Fast path (matches the reference forward exactly: no kernel).
    out_fast = adapter_d_forward(v_features, params)
    assert out_fast.shape == v_features.shape and out_fast.dtype == v_features.dtype

    # Pallas parity path: small input (single full-extent block).
    out = jax.block_until_ready(adapter_d_forward_pallas(v_features, params))
    assert out.shape == v_features.shape
    assert out.dtype == v_features.dtype
    assert bool(jnp.array_equal(out, v_features))

    # Exercise the multi-block tiled path (wide lane dim, >=2 grid steps).
    key2 = jax.random.PRNGKey(1)
    v_big = jax.random.normal(key2, (64, 1024), dtype=jnp.float32)
    out_big = jax.block_until_ready(adapter_d_forward_pallas(v_big, params))
    assert bool(jnp.array_equal(out_big, v_big))

    # Non-128-divisible element count: identity bypass (no kernel).
    v_odd = jax.random.normal(key, (B, T, 20), dtype=jnp.float32)
    out_odd = jax.block_until_ready(adapter_d_forward_pallas(v_odd, params))
    assert bool(jnp.array_equal(out_odd, v_odd))

    print("KERNEL_OK")
</pallas_src>

<mosaic_0001>
module attributes {stable_mosaic.version = 11 : i64} {
  func.func @_copy_kernel(%arg0: i32, %arg1: memref<1x512xf32, #tpu.memory_space<vmem>>, %arg2: memref<1x512xf32, #tpu.memory_space<vmem>>) attributes {dimension_semantics = [#tpu.dimension_semantics<parallel>], iteration_bounds = array<i64: 1>, scalar_prefetch = 0 : i64, scratch_operands = 0 : i64, tpu.core_type = #tpu.core_type<tc>, window_params = [{transform_indices = @transform_0, window_bounds = array<i64: 1, 512>}, {transform_indices = @transform_1, window_bounds = array<i64: 1, 512>}]} {
    %c0 = arith.constant 0 : index
    %c0_0 = arith.constant 0 : index
    %0 = vector.load %arg1[%c0, %c0_0] : memref<1x512xf32, #tpu.memory_space<vmem>>, vector<1x512xf32>
    %c0_1 = arith.constant 0 : index
    %c0_2 = arith.constant 0 : index
    %1 = vector.load %arg2[%c0_1, %c0_2] : memref<1x512xf32, #tpu.memory_space<vmem>>, vector<1x512xf32>
    tpu.vector_store %arg2[%c0_1, %c0_2], %0 {strides = array<i32>} : memref<1x512xf32, #tpu.memory_space<vmem>>, vector<1x512xf32>,
    return
  }
  func.func @transform_0(%arg0: i32) -> (i32, i32) {
    %c0_i32 = arith.constant 0 : i32
    %c0_i32_0 = arith.constant 0 : i32
    return %arg0, %c0_i32 : i32, i32
  }
  func.func @transform_1(%arg0: i32) -> (i32, i32) {
    %c0_i32 = arith.constant 0 : i32
    %c0_i32_0 = arith.constant 0 : i32
    return %arg0, %c0_i32 : i32, i32
  }
}

</mosaic_0001>

<llo_original>
// kernel: tpu_custom_call.1
$region0: #{tpu_custom_call.1}
  #allocation0 [shape = 'u32[]', space=smem, size = 0x4, offset = 0x4, fixed_abs, tag = 'smem constant byte address 0x4 - core index']
  #allocation1 [shape = 'u32[144,128]{1,0:T(1,128)}', space=vmem, size = 0x12000, scoped, tag = 'internal scratch']
  %s0 = inlined_call_operand.hbm [shape: f32[1,512], index: 0, kind: input, shape index: {}]
  %s1 = inlined_call_operand.hbm [shape: f32[1,512], index: 1, kind: output, shape index: {}]
  %s2 = sld [smem:[#allocation0]]
  $region18: #{tpu_custom_call.1} parent=0
    _
  %s4 = ssub.s32 1, %s2
  %s5 = scalar_select 0, %s4, %s2
  $region1: #{tpu_custom_call.1} parent=0
    #allocation2 [shape = 'u8[2048]{0}', space=vmem, size = 0x800, scoped, tag = 'input window, operand 0, single buffered']
    #allocation3 [shape = 's32[1]{0}', space=sflag, size = 0x4, scoped, tag = 'scoped memory for tpu_custom_call.1']
    #allocation4 [shape = 's32[1]{0}', space=sflag, size = 0x4, scoped, tag = 'scoped memory for tpu_custom_call.1']
    #allocation5 [shape = 'u8[2048]{0}', space=vmem, size = 0x800, scoped, tag = 'output window, operand 0, single buffered']
    %6 = vsyncpa [#allocation3], 0
    %7 = vsyncpa [#allocation4], 0
    // Predicated region
    $region2: #{tpu_custom_call.1} parent=1 // pred_check
      _
    $region3: #{tpu_custom_call.1} parent=1 // pred_check_branch
      %9 = sbr.rel (0) target = $region5
    $region4: #{tpu_custom_call.1} parent=1 // pred_region
      %s11 = ssub.s32 64, 64
      %12 = vsyncadd [#allocation3], %s11
      %s14 = sshll.u32 [#allocation2], 4
      %s15 = int_to_ptr.vmem [resolvable:$true] %s14
      %17 = dma.hbm_to_vmem [thread:$0]  %s0, 64, %s15, [#allocation3]
    $region5: #{tpu_custom_call.1} parent=1 // pred_fallthru
      _
    // Predicated region
    $region6: #{tpu_custom_call.1} parent=1 // pred_check
      _
    $region7: #{tpu_custom_call.1} parent=1 // pred_check_branch
      %19 = sbr.rel (0) target = $region9
    $region8: #{tpu_custom_call.1} parent=1 // pred_region
      %20 = dma.done [#allocation3], 64
    $region9: #{tpu_custom_call.1} parent=1 // pred_fallthru
      _
    %v21 = vld [vmem:[#allocation2] sm:$0xf]
    %v22 = vlaneseq
    %vm23 = vcmp.ge.s32.totalorder %v22, 0
    %vm24 = vcmp.lt.s32.totalorder %v22, 512
    %vm25 = vmand %vm23, %vm24
    %26 = vst.msk [vmem:[#allocation5] sm:$0xf] %vm25, %v21
    // Predicated region
    $region10: #{tpu_custom_call.1} parent=1 // pred_check
      _
    $region11: #{tpu_custom_call.1} parent=1 // pred_check_branch
      %28 = sbr.rel (0) target = $region13
    $region12: #{tpu_custom_call.1} parent=1 // pred_region
      %s30 = ssub.s32 64, 64
      %31 = vsyncadd [#allocation4], %s30
      %s33 = sshll.u32 [#allocation5], 4
      %s34 = int_to_ptr.vmem [resolvable:$true] %s33
      %36 = dma.vmem_to_hbm [thread:$0]  %s34, 64, %s1, [#allocation4]
    $region13: #{tpu_custom_call.1} parent=1 // pred_fallthru
      _
    // Predicated region
    $region14: #{tpu_custom_call.1} parent=1 // pred_check
      _
    $region15: #{tpu_custom_call.1} parent=1 // pred_check_branch
      %38 = sbr.rel (0) target = $region17
    $region16: #{tpu_custom_call.1} parent=1 // pred_region
      %39 = dma.done [#allocation4], 64
    $region17: #{tpu_custom_call.1} parent=1 // pred_fallthru
      _
    %40 = vsyncpa [#allocation3], 1
    %41 = vsyncpa [#allocation4], 1

</llo_original>
